<compile_context>
chip_gen: v6e
topology: v6e:2x2x1
jax: 0.10.0
libtpu: 0.0.40
codegen_flags: <defaults>
</compile_context>

<pallas_src>
import functools

import jax
import jax.numpy as jnp
from jax import lax
from jax.experimental import pallas as pl
from jax.experimental.pallas import tpu as pltpu


TEMPERATURE = 0.07
SMOOTHING = 0.1
NORM_EPS = 1e-12  # matches torch.nn.functional.normalize default eps


def _contrastive_loss_kernel(img_ref, txt_ref, out_ref,
                             txtn_ref, csum_ref, acc_ref,
                             *, n_total, row_tile):
    i = pl.program_id(0)
    last = pl.num_programs(0) - 1

    inv_temp = jnp.float32(1.0 / TEMPERATURE)
    eps2 = jnp.float32(NORM_EPS * NORM_EPS)

    # ---- one-time setup on the first row tile ------------------------------
    @pl.when(i == 0)
    def _init():
        txt = txt_ref[...]
        sq = jnp.sum(txt * txt, axis=1, keepdims=True)
        # 1/max(||x||, eps) == rsqrt(max(||x||^2, eps^2)); rsqrt uses the EUP.
        txtn_ref[...] = txt * lax.rsqrt(jnp.maximum(sq, eps2))
        csum_ref[...] = jnp.zeros(csum_ref.shape, jnp.float32)
        acc_ref[0] = jnp.float32(0.0)   # total sum of logits
        acc_ref[1] = jnp.float32(0.0)   # trace(logits)
        acc_ref[2] = jnp.float32(0.0)   # sum of row logsumexp

    # ---- normalize this image row tile, folding 1/temperature in -----------
    img = img_ref[...]
    sq = jnp.sum(img * img, axis=1, keepdims=True)
    img_s = img * (lax.rsqrt(jnp.maximum(sq, eps2)) * inv_temp)

    # ---- logits panel [row_tile, N] on the MXU (contract dim 1 with dim 1) -
    # TODO(synk): cast img_s/txtn to bf16 for 2-4x MXU throughput if the
    # precision budget allows; kept f32 to match the reference tightly.
    panel = lax.dot_general(
        img_s, txtn_ref[...],
        dimension_numbers=(((1,), (1,)), ((), ())),
        preferred_element_type=jnp.float32)

    # ---- one exp over the panel feeds both softmax directions --------------
    # |panel| <= 1/temperature ~= 14.29 because both operands are row-wise
    # unit-normalized, so exp(panel) is in [~6e-7, ~1.6e6]: no overflow and
    # no max-shift needed for either logsumexp direction.
    ep = jnp.exp(panel)                                    # [row_tile, N]
    row_sum = jnp.sum(ep, axis=1, keepdims=True)           # [row_tile, 1]
    csum_ref[...] += jnp.sum(ep, axis=0, keepdims=True)    # running column sums

    # diagonal entries of the global logits matrix that live in this panel
    r_loc = lax.broadcasted_iota(jnp.int32, panel.shape, 0)
    c_idx = lax.broadcasted_iota(jnp.int32, panel.shape, 1)
    diag_mask = c_idx == (r_loc + i * row_tile)

    acc_ref[0] += jnp.sum(panel)
    acc_ref[1] += jnp.sum(jnp.where(diag_mask, panel, jnp.float32(0.0)))
    acc_ref[2] += jnp.sum(jnp.log(row_sum))

    # ---- finalize: reduce to the scalar loss --------------------------------
    @pl.when(i == last)
    def _finalize():
        sum_col_lse = jnp.sum(jnp.log(csum_ref[...]))
        n_f = jnp.float32(n_total)
        # static (trace-time) smoothing constants
        alpha = SMOOTHING / (n_total - 1)
        beta = 1.0 - SMOOTHING - alpha
        w_lse = jnp.float32(alpha * n_total + beta)
        # sum_j smoothed[i,j]*lp[i,j] = alpha*row_sum_lp[i] + beta*lp[i,i]
        common = jnp.float32(alpha) * acc_ref[0] + jnp.float32(beta) * acc_ref[1]
        loss_img = -(common - w_lse * acc_ref[2]) / n_f
        loss_txt = -(common - w_lse * sum_col_lse) / n_f
        out_ref[0, 0] = jnp.float32(0.5) * (loss_img + loss_txt)


def _pick_row_tile(n):
    for t in (512, 256, 128, 64, 32, 16, 8):
        if n % t == 0:
            return t
    return n  # fall back to a single full-height tile


def contrastive_loss(logits_per_image, logits_per_text, *, row_tile=None):
    n, d = logits_per_image.shape
    assert logits_per_text.shape == (n, d)
    assert n > 1, "label smoothing requires a batch of at least 2"

    if row_tile is None:
        row_tile = _pick_row_tile(n)
    assert n % row_tile == 0
    num_tiles = n // row_tile

    kernel = functools.partial(_contrastive_loss_kernel,
                               n_total=n, row_tile=row_tile)

    # VMEM budget: normalized-text scratch + resident text block +
    # double-buffered image tiles + the [row_tile, N] panel & exp temp +
    # the column-sum carry, plus generous headroom for compiler temps.
    vmem_bytes = 4 * (2 * n * d + 4 * row_tile * d + 3 * row_tile * n + 2 * n)
    vmem_bytes = int(min(max(4 * vmem_bytes, 16 << 20), 100 << 20))

    cost = pl.CostEstimate(
        flops=2 * n * n * d + 6 * n * d,
        transcendentals=n * n + 4 * n,
        bytes_accessed=2 * n * d * 4 + 4,
    )

    out = pl.pallas_call(
        kernel,
        out_shape=jax.ShapeDtypeStruct((1, 1), jnp.float32),
        grid=(num_tiles,),
        in_specs=[
            pl.BlockSpec((row_tile, d), lambda i: (i, 0)),   # image row tile
            pl.BlockSpec((n, d), lambda i: (0, 0)),          # full text (resident)
        ],
        out_specs=pl.BlockSpec((1, 1), lambda i: (0, 0),
                               memory_space=pltpu.SMEM),
        scratch_shapes=[
            pltpu.VMEM((n, d), jnp.float32),   # normalized text embeddings
            pltpu.VMEM((1, n), jnp.float32),   # running column sum-exp
            pltpu.SMEM((3,), jnp.float32),     # [total_sum, trace, sum_row_lse]
        ],
        compiler_params=pltpu.CompilerParams(
            dimension_semantics=("arbitrary",),   # sequential: column-sum carry
            vmem_limit_bytes=vmem_bytes),
        cost_estimate=cost,
    )(logits_per_image.astype(jnp.float32), logits_per_text.astype(jnp.float32))
    return out[0, 0]


def _reference_loss(img, txt):
    # pure-JAX reference of the PyTorch forward, for sanity checking
    img = img / jnp.maximum(jnp.linalg.norm(img, axis=1, keepdims=True), NORM_EPS)
    txt = txt / jnp.maximum(jnp.linalg.norm(txt, axis=1, keepdims=True), NORM_EPS)
    logits = img @ txt.T / TEMPERATURE
    n = logits.shape[0]
    smoothed = jnp.full((n, n), SMOOTHING / (n - 1))
    smoothed = smoothed.at[jnp.arange(n), jnp.arange(n)].set(1.0 - SMOOTHING)
    lp_img = jax.nn.log_softmax(logits, axis=1)
    lp_txt = jax.nn.log_softmax(logits.T, axis=1)
    loss_img = -jnp.mean(jnp.sum(smoothed * lp_img, axis=1))
    loss_txt = -jnp.mean(jnp.sum(smoothed * lp_txt, axis=1))
    return (loss_img + loss_txt) * 0.5


if __name__ == "__main__":
    key = jax.random.PRNGKey(0)
    k1, k2 = jax.random.split(key)
    N, D = 32, 128  # small batch of image/text embeddings (lane-dense D)
    logits_per_image = jax.random.normal(k1, (N, D), dtype=jnp.float32)
    logits_per_text = jax.random.normal(k2, (N, D), dtype=jnp.float32)

    # row_tile=8 -> grid of 4 row tiles, exercising pipelining + the
    # column-sum carry across grid steps.
    loss = contrastive_loss(logits_per_image, logits_per_text, row_tile=8)
    jax.block_until_ready(loss)

    ref = _reference_loss(logits_per_image, logits_per_text)
    assert jnp.allclose(loss, ref, rtol=1e-5, atol=1e-5), (loss, ref)

    print("KERNEL_OK")
</pallas_src>

<mosaic_0001>
module attributes {stable_mosaic.version = 11 : i64} {
  func.func @_contrastive_loss_kernel(%arg0: i32, %arg1: memref<8x128xf32, #tpu.memory_space<vmem>>, %arg2: memref<32x128xf32, #tpu.memory_space<vmem>>, %arg3: memref<1x1xf32, #tpu.memory_space<smem>>, %arg4: memref<32x128xf32, #tpu.memory_space<vmem>>, %arg5: memref<1x32xf32, #tpu.memory_space<vmem>>, %arg6: memref<3xf32, #tpu.memory_space<smem>>) attributes {dimension_semantics = [#tpu.dimension_semantics<arbitrary>], iteration_bounds = array<i64: 4>, scalar_prefetch = 0 : i64, scratch_operands = 3 : i64, tpu.core_type = #tpu.core_type<tc>, window_params = [{transform_indices = @transform_0, window_bounds = array<i64: 8, 128>}, {pipeline_mode = #tpu.pipeline_mode<synchronous>, transform_indices = @transform_1, window_bounds = array<i64: 32, 128>}, {transform_indices = @transform_2, window_bounds = array<i64: 1, 1>}]} {
    %c0_i32 = arith.constant 0 : i32
    %0 = arith.cmpi eq, %arg0, %c0_i32 : i32
    %1 = arith.extui %0 : i1 to i32
    %cst = arith.constant 1.000000e-24 : f32
    %c0_i32_0 = arith.constant 0 : i32
    %2 = arith.cmpi ne, %1, %c0_i32_0 : i32
    scf.if %2 {
      %c0_23 = arith.constant 0 : index
      %c0_24 = arith.constant 0 : index
      %57 = vector.load %arg2[%c0_23, %c0_24] : memref<32x128xf32, #tpu.memory_space<vmem>>, vector<32x128xf32>
      %58 = arith.mulf %57, %57 : vector<32x128xf32>
      %cst_25 = arith.constant dense<0.000000e+00> : vector<32xf32>
      %59 = vector.multi_reduction <add>, %58, %cst_25 [1] : vector<32x128xf32> to vector<32xf32>
      %60 = vector.shape_cast %59 : vector<32xf32> to vector<32x1xf32>
      %61 = vector.broadcast %cst : f32 to vector<32x1xf32>
      %62 = arith.maximumf %60, %61 : vector<32x1xf32>
      %63 = math.rsqrt %62 : vector<32x1xf32>
      %64 = vector.broadcast %63 : vector<32x1xf32> to vector<32x128xf32>
      %65 = arith.mulf %57, %64 : vector<32x128xf32>
      %c0_26 = arith.constant 0 : index
      %c0_27 = arith.constant 0 : index
      %66 = vector.load %arg4[%c0_26, %c0_27] : memref<32x128xf32, #tpu.memory_space<vmem>>, vector<32x128xf32>
      tpu.vector_store %arg4[%c0_26, %c0_27], %65 {strides = array<i32>} : memref<32x128xf32, #tpu.memory_space<vmem>>, vector<32x128xf32>,
      %cst_28 = arith.constant 0.000000e+00 : f32
      %67 = vector.broadcast %cst_28 : f32 to vector<1x32xf32>
      %c0_29 = arith.constant 0 : index
      %c0_30 = arith.constant 0 : index
      %68 = vector.load %arg5[%c0_29, %c0_30] : memref<1x32xf32, #tpu.memory_space<vmem>>, vector<1x32xf32>
      tpu.vector_store %arg5[%c0_29, %c0_30], %67 {strides = array<i32>} : memref<1x32xf32, #tpu.memory_space<vmem>>, vector<1x32xf32>,
      %cst_31 = arith.constant 0.000000e+00 : f32
      %c0_32 = arith.constant 0 : index
      %69 = memref.load %arg6[%c0_32] : memref<3xf32, #tpu.memory_space<smem>>
      memref.store %cst_31, %arg6[%c0_32] : memref<3xf32, #tpu.memory_space<smem>>
      %cst_33 = arith.constant 0.000000e+00 : f32
      %c1_34 = arith.constant 1 : index
      %70 = memref.load %arg6[%c1_34] : memref<3xf32, #tpu.memory_space<smem>>
      memref.store %cst_33, %arg6[%c1_34] : memref<3xf32, #tpu.memory_space<smem>>
      %cst_35 = arith.constant 0.000000e+00 : f32
      %c2_36 = arith.constant 2 : index
      %71 = memref.load %arg6[%c2_36] : memref<3xf32, #tpu.memory_space<smem>>
      memref.store %cst_35, %arg6[%c2_36] : memref<3xf32, #tpu.memory_space<smem>>
    } else {
    }
    %c0 = arith.constant 0 : index
    %c0_1 = arith.constant 0 : index
    %3 = vector.load %arg1[%c0, %c0_1] : memref<8x128xf32, #tpu.memory_space<vmem>>, vector<8x128xf32>
    %4 = arith.mulf %3, %3 : vector<8x128xf32>
    %cst_2 = arith.constant dense<0.000000e+00> : vector<8xf32>
    %5 = vector.multi_reduction <add>, %4, %cst_2 [1] : vector<8x128xf32> to vector<8xf32>
    %6 = vector.shape_cast %5 : vector<8xf32> to vector<8x1xf32>
    %cst_3 = arith.constant 1.000000e-24 : f32
    %7 = vector.broadcast %cst_3 : f32 to vector<8x1xf32>
    %8 = arith.maximumf %6, %7 : vector<8x1xf32>
    %9 = math.rsqrt %8 : vector<8x1xf32>
    %cst_4 = arith.constant 14.2857141 : f32
    %10 = vector.broadcast %cst_4 : f32 to vector<8x1xf32>
    %11 = arith.mulf %9, %10 : vector<8x1xf32>
    %12 = vector.broadcast %11 : vector<8x1xf32> to vector<8x128xf32>
    %13 = arith.mulf %3, %12 : vector<8x128xf32>
    %c0_5 = arith.constant 0 : index
    %c0_6 = arith.constant 0 : index
    %14 = vector.load %arg4[%c0_5, %c0_6] : memref<32x128xf32, #tpu.memory_space<vmem>>, vector<32x128xf32>
    %cst_7 = arith.constant dense<0.000000e+00> : vector<8x32xf32>
    %15 = tpu.matmul %13, %14, %cst_7 {dimension_numbers = #tpu.dot_dimension_numbers<[1], [1], [0], [0], [0, 0, 1, 0], [], []>} : vector<8x128xf32>, vector<32x128xf32>, vector<8x32xf32> -> vector<8x32xf32>
    %16 = math.exp %15 : vector<8x32xf32>
    %cst_8 = arith.constant dense<0.000000e+00> : vector<8xf32>
    %17 = vector.multi_reduction <add>, %16, %cst_8 [1] : vector<8x32xf32> to vector<8xf32>
    %18 = vector.shape_cast %17 : vector<8xf32> to vector<8x1xf32>
    %c0_9 = arith.constant 0 : index
    %c0_10 = arith.constant 0 : index
    %19 = vector.load %arg5[%c0_9, %c0_10] : memref<1x32xf32, #tpu.memory_space<vmem>>, vector<1x32xf32>
    %cst_11 = arith.constant dense<0.000000e+00> : vector<32xf32>
    %20 = vector.multi_reduction <add>, %16, %cst_11 [0] : vector<8x32xf32> to vector<32xf32>
    %21 = vector.shape_cast %20 : vector<32xf32> to vector<1x32xf32>
    %22 = arith.addf %19, %21 : vector<1x32xf32>
    %c0_12 = arith.constant 0 : index
    %c0_13 = arith.constant 0 : index
    %23 = vector.load %arg5[%c0_12, %c0_13] : memref<1x32xf32, #tpu.memory_space<vmem>>, vector<1x32xf32>
    tpu.vector_store %arg5[%c0_12, %c0_13], %22 {strides = array<i32>} : memref<1x32xf32, #tpu.memory_space<vmem>>, vector<1x32xf32>,
    %24 = tpu.iota {dimensions = array<i32: 0>} : vector<8x32xi32>
    %25 = tpu.iota {dimensions = array<i32: 1>} : vector<8x32xi32>
    %c8_i32 = arith.constant 8 : i32
    %26 = arith.muli %arg0, %c8_i32 : i32
    %27 = vector.broadcast %26 : i32 to vector<8x32xi32>
    %28 = arith.addi %24, %27 : vector<8x32xi32>
    %29 = arith.cmpi eq, %25, %28 : vector<8x32xi32>
    %c0_14 = arith.constant 0 : index
    %30 = memref.load %arg6[%c0_14] : memref<3xf32, #tpu.memory_space<smem>>
    %31 = vector.shape_cast %15 : vector<8x32xf32> to vector<1x8x32xf32>
    %cst_15 = arith.constant dense<0.000000e+00> : vector<1xf32>
    %32 = vector.multi_reduction <add>, %31, %cst_15 [1, 2] : vector<1x8x32xf32> to vector<1xf32>
    %33 = vector.shape_cast %32 : vector<1xf32> to vector<1x1x1xf32>
    %34 = vector.extract %33[0, 0, 0] : f32 from vector<1x1x1xf32>
    %35 = arith.addf %30, %34 : f32
    %c0_16 = arith.constant 0 : index
    %36 = memref.load %arg6[%c0_16] : memref<3xf32, #tpu.memory_space<smem>>
    memref.store %35, %arg6[%c0_16] : memref<3xf32, #tpu.memory_space<smem>>
    %c1 = arith.constant 1 : index
    %37 = memref.load %arg6[%c1] : memref<3xf32, #tpu.memory_space<smem>>
    %cst_17 = arith.constant 0.000000e+00 : f32
    %38 = vector.broadcast %cst_17 : f32 to vector<8x32xf32>
    %39 = arith.select %29, %15, %38 : vector<8x32xi1>, vector<8x32xf32>
    %40 = vector.shape_cast %39 : vector<8x32xf32> to vector<1x8x32xf32>
    %cst_18 = arith.constant dense<0.000000e+00> : vector<1xf32>
    %41 = vector.multi_reduction <add>, %40, %cst_18 [1, 2] : vector<1x8x32xf32> to vector<1xf32>
    %42 = vector.shape_cast %41 : vector<1xf32> to vector<1x1x1xf32>
    %43 = vector.extract %42[0, 0, 0] : f32 from vector<1x1x1xf32>
    %44 = arith.addf %37, %43 : f32
    %c1_19 = arith.constant 1 : index
    %45 = memref.load %arg6[%c1_19] : memref<3xf32, #tpu.memory_space<smem>>
    memref.store %44, %arg6[%c1_19] : memref<3xf32, #tpu.memory_space<smem>>
    %c2 = arith.constant 2 : index
    %46 = memref.load %arg6[%c2] : memref<3xf32, #tpu.memory_space<smem>>
    %47 = math.log %18 : vector<8x1xf32>
    %48 = vector.shape_cast %47 : vector<8x1xf32> to vector<1x8x1xf32>
    %cst_20 = arith.constant dense<0.000000e+00> : vector<1xf32>
    %49 = vector.multi_reduction <add>, %48, %cst_20 [1, 2] : vector<1x8x1xf32> to vector<1xf32>
    %50 = vector.shape_cast %49 : vector<1xf32> to vector<1x1x1xf32>
    %51 = vector.extract %50[0, 0, 0] : f32 from vector<1x1x1xf32>
    %52 = arith.addf %46, %51 : f32
    %c2_21 = arith.constant 2 : index
    %53 = memref.load %arg6[%c2_21] : memref<3xf32, #tpu.memory_space<smem>>
    memref.store %52, %arg6[%c2_21] : memref<3xf32, #tpu.memory_space<smem>>
    %c3_i32 = arith.constant 3 : i32
    %54 = arith.cmpi eq, %arg0, %c3_i32 : i32
    %55 = arith.extui %54 : i1 to i32
    %c0_i32_22 = arith.constant 0 : i32
    %56 = arith.cmpi ne, %55, %c0_i32_22 : i32
    scf.if %56 {
      %c0_23 = arith.constant 0 : index
      %c0_24 = arith.constant 0 : index
      %57 = vector.load %arg5[%c0_23, %c0_24] : memref<1x32xf32, #tpu.memory_space<vmem>>, vector<1x32xf32>
      %58 = math.log %57 : vector<1x32xf32>
      %59 = vector.shape_cast %58 : vector<1x32xf32> to vector<1x1x32xf32>
      %cst_25 = arith.constant dense<0.000000e+00> : vector<1xf32>
      %60 = vector.multi_reduction <add>, %59, %cst_25 [1, 2] : vector<1x1x32xf32> to vector<1xf32>
      %61 = vector.shape_cast %60 : vector<1xf32> to vector<1x1x1xf32>
      %62 = vector.extract %61[0, 0, 0] : f32 from vector<1x1x1xf32>
      %c0_26 = arith.constant 0 : index
      %63 = memref.load %arg6[%c0_26] : memref<3xf32, #tpu.memory_space<smem>>
      %cst_27 = arith.constant 0.0032258064 : f32
      %64 = arith.mulf %cst_27, %63 : f32
      %c1_28 = arith.constant 1 : index
      %65 = memref.load %arg6[%c1_28] : memref<3xf32, #tpu.memory_space<smem>>
      %cst_29 = arith.constant 0.896774172 : f32
      %66 = arith.mulf %cst_29, %65 : f32
      %67 = arith.addf %64, %66 : f32
      %c2_30 = arith.constant 2 : index
      %68 = memref.load %arg6[%c2_30] : memref<3xf32, #tpu.memory_space<smem>>
      %cst_31 = arith.constant 1.000000e+00 : f32
      %69 = arith.mulf %cst_31, %68 : f32
      %70 = arith.subf %67, %69 : f32
      %cst_32 = arith.constant 0.000000e+00 : f32
      %71 = arith.subf %cst_32, %70 : f32
      %cst_33 = arith.constant 3.200000e+01 : f32
      %72 = arith.divf %71, %cst_33 : f32
      %cst_34 = arith.constant 1.000000e+00 : f32
      %73 = arith.mulf %cst_34, %62 : f32
      %74 = arith.subf %67, %73 : f32
      %cst_35 = arith.constant 0.000000e+00 : f32
      %75 = arith.subf %cst_35, %74 : f32
      %cst_36 = arith.constant 3.200000e+01 : f32
      %76 = arith.divf %75, %cst_36 : f32
      %77 = arith.addf %72, %76 : f32
      %cst_37 = arith.constant 5.000000e-01 : f32
      %78 = arith.mulf %cst_37, %77 : f32
      %c0_38 = arith.constant 0 : index
      %c0_39 = arith.constant 0 : index
      %79 = memref.load %arg3[%c0_38, %c0_39] : memref<1x1xf32, #tpu.memory_space<smem>>
      memref.store %78, %arg3[%c0_38, %c0_39] : memref<1x1xf32, #tpu.memory_space<smem>>
    } else {
    }
    return
  }
  func.func @transform_0(%arg0: i32) -> (i32, i32) {
    %c0_i32 = arith.constant 0 : i32
    %c0_i32_0 = arith.constant 0 : i32
    return %arg0, %c0_i32 : i32, i32
  }
  func.func @transform_1(%arg0: i32) -> (i32, i32) {
    %c0_i32 = arith.constant 0 : i32
    %c0_i32_0 = arith.constant 0 : i32
    %c0_i32_1 = arith.constant 0 : i32
    return %c0_i32, %c0_i32_0 : i32, i32
  }
  func.func @transform_2(%arg0: i32) -> (i32, i32) {
    %c0_i32 = arith.constant 0 : i32
    %c0_i32_0 = arith.constant 0 : i32
    %c0_i32_1 = arith.constant 0 : i32
    return %c0_i32, %c0_i32_0 : i32, i32
  }
}

</mosaic_0001>

<llo_original>
// kernel: tpu_custom_call.1
$region0: #{tpu_custom_call.1}
  #allocation0 [shape = 'u32[]', space=smem, size = 0x4, offset = 0x4, fixed_abs, tag = 'smem constant byte address 0x4 - core index']
  #allocation1 [shape = 'u32[144,128]{1,0:T(1,128)}', space=vmem, size = 0x12000, scoped, tag = 'internal scratch']
  #allocation2 [shape = 'f32[32,128]{1,0:T(8,128)}', space=vmem, size = 0x4000, scoped, tag = 'scratch operand']
  #allocation3 [shape = 'f32[1,32]{1,0:T(1,128)}', space=vmem, size = 0x200, scoped, tag = 'scratch operand']
  #allocation4 [shape = 'f32[3]{0:T(128)}', space=smem, size = 0x200, scoped, tag = 'scratch operand']
  %s0 = inlined_call_operand.hbm [shape: f32[32,128], index: 0, kind: input, shape index: {}]
  %s1 = inlined_call_operand.hbm [shape: f32[32,128], index: 1, kind: input, shape index: {}]
  %s2 = inlined_call_operand.hbm [shape: f32[1,1], index: 2, kind: output, shape index: {}]
  %s3 = sld [smem:[#allocation0]]
  $region57: #{tpu_custom_call.1} parent=0
    _
  %s5 = ssub.s32 1, %s3
  %s6 = scalar_select 0, %s5, %s3
  $region1: #{tpu_custom_call.1} parent=0
    #allocation5 [shape = 'u8[8192]{0}', space=vmem, size = 0x2000, scoped, tag = 'input window, operand 0']
    #allocation6 [shape = 's32[2]{0}', space=sflag, size = 0x8, scoped, tag = 'scoped memory for tpu_custom_call.1']
    #allocation7 [shape = 's32[2]{0}', space=sflag, size = 0x8, scoped, tag = 'scoped memory for tpu_custom_call.1']
    #allocation8 [shape = 'u8[16384]{0}', space=vmem, size = 0x4000, scoped, tag = 'input window, operand 1, single buffered']
    #allocation9 [shape = 's32[1]{0}', space=sflag, size = 0x4, scoped, tag = 'scoped memory for tpu_custom_call.1']
    #allocation10 [shape = 'u8[512]{0}', space=smem, size = 0x200, scoped, tag = 'output window, operand 0, single buffered']
    %7 = vsyncpa [#allocation6], 0
    %s8 = scalar_lea.sflag [#allocation6], 1
    %9 = vsyncpa %s8, 0
    %10 = vsyncpa [#allocation9], 0
    %11 = vsyncpa [#allocation7], 0
    loop: start=0, step=1, limit=6
    $region2: #{tpu_custom_call.1} parent=1 // loop_pre_header
      _
    $region3: #{tpu_custom_call.1} parent=1 // loop_header
      %s13 = sphi 0, %s17
      %p14 = scmp.ge.s32.totalorder %s13, 6
      %s23 = sphi 0, %s25
      %s26 = sphi 0, %s23
      %s27 = sphi 0, %s26
      %s43 = sphi 0, %s27
      %s47 = sphi 0, %s47
      %s49 = sphi 0, %s47
      %s50 = sphi 0, %s49
      %s64 = sphi 0, %s50
      %s68 = sphi 0, %s68
      %s70 = sphi 0, %s68
      %s71 = sphi 0, %s70
      %s85 = sphi 0, %s71
    $region4: #{tpu_custom_call.1} parent=1 // loop_header_branch
      %16 = sbr.rel (%p14) target = $region8
    $region5: #{tpu_custom_call.1} parent=1 // loop_body
      %s18 = ssub.s32 %s13, 1
      %s19 = ssub.s32 %s13, 2
      %s20 = sadd.s32 %s13, 1
      %s21 = ssub.s32 %s13, %s20
      %p22 = scmp.eq.s32.totalorder %s21, 0
      %s24 = sadd.s32 %s23, 1
      %s25 = scalar_select %p22, %s23, %s24
      %p28 = pneg %p22
      %p29 = scmp.eq.s32.totalorder %s13, 3
      %p30 = por %p28, %p29
      %p31 = scmp.ne.s32.totalorder %s23, %s26
      %p32 = scmp.eq.s32.totalorder %s13, 0
      %p33 = por %p31, %p32
      %p34 = scmp.ne.s32.totalorder %s23, %s26
      %p35 = scmp.eq.s32.totalorder %s18, 3
      %p36 = por %p34, %p35
      %p37 = scmp.ne.s32.totalorder %s26, %s27
      %p38 = scmp.eq.s32.totalorder %s18, 0
      %p39 = por %p37, %p38
      %p40 = scmp.ne.s32.totalorder %s26, %s27
      %p41 = scmp.eq.s32.totalorder %s19, 3
      %p42 = por %p40, %p41
      %p44 = scmp.ne.s32.totalorder %s27, %s43
      %p45 = scmp.eq.s32.totalorder %s19, 0
      %p46 = por %p44, %p45
      %s48 = sadd.s32 %s47, 1
      %p51 = scmp.eq.s32.totalorder %s13, 3
      %p52 = scmp.ne.s32.totalorder %s47, %s49
      %p53 = scmp.eq.s32.totalorder %s13, 0
      %p54 = por %p52, %p53
      %p55 = scmp.ne.s32.totalorder %s47, %s49
      %p56 = scmp.eq.s32.totalorder %s18, 3
      %p57 = por %p55, %p56
      %p58 = scmp.ne.s32.totalorder %s49, %s50
      %p59 = scmp.eq.s32.totalorder %s18, 0
      %p60 = por %p58, %p59
      %p61 = scmp.ne.s32.totalorder %s49, %s50
      %p62 = scmp.eq.s32.totalorder %s19, 3
      %p63 = por %p61, %p62
      %p65 = scmp.ne.s32.totalorder %s50, %s64
      %p66 = scmp.eq.s32.totalorder %s19, 0
      %p67 = por %p65, %p66
      %s69 = sadd.s32 %s68, 1
      %p72 = scmp.eq.s32.totalorder %s13, 3
      %p73 = scmp.ne.s32.totalorder %s68, %s70
      %p74 = scmp.eq.s32.totalorder %s13, 0
      %p75 = por %p73, %p74
      %p76 = scmp.ne.s32.totalorder %s68, %s70
      %p77 = scmp.eq.s32.totalorder %s18, 3
      %p78 = por %p76, %p77
      %p79 = scmp.ne.s32.totalorder %s70, %s71
      %p80 = scmp.eq.s32.totalorder %s18, 0
      %p81 = por %p79, %p80
      %p82 = scmp.ne.s32.totalorder %s70, %s71
      %p83 = scmp.eq.s32.totalorder %s19, 3
      %p84 = por %p82, %p83
      %p86 = scmp.ne.s32.totalorder %s71, %s85
      %p87 = scmp.eq.s32.totalorder %s19, 0
      %p88 = por %p86, %p87
      %p89 = scmp.le.s32.totalorder 1, %s13
      %p90 = scmp.lt.s32.totalorder %s13, 5
      %p91 = pnand %p89, %p90
      %p92 = pneg %p91
      // Predicated region
      $region9: #{tpu_custom_call.1} parent=5 // pred_check
        _
      $region10: #{tpu_custom_call.1} parent=5 // pred_check_branch
        %94 = sbr.rel (%p91) target = $region12
      $region11: #{tpu_custom_call.1} parent=5 // pred_region
        %s95 = ssub.s32 %s13, 1
        // Predicated region
        $region13: #{tpu_custom_call.1} parent=11 // pred_check
          %p96 = pneg %p60
        $region14: #{tpu_custom_call.1} parent=11 // pred_check_branch
          %98 = sbr.rel (%p96) target = $region16
        $region15: #{tpu_custom_call.1} parent=11 // pred_region
          %s100 = ssub.s32 512, 512
          %101 = vsyncadd [#allocation9], %s100
          %s102 = sshll.u32 [#allocation8], 4
          %s103 = int_to_ptr.vmem [resolvable:$true] %s102
          %108 = dma.hbm_to_vmem [thread:$0]  %s1, 512, %s103, [#allocation9], 128, 128, 8
        $region16: #{tpu_custom_call.1} parent=11 // pred_fallthru
          _
      $region12: #{tpu_custom_call.1} parent=5 // pred_fallthru
        _
      %p109 = scmp.lt.s32.totalorder %s13, 4
      // Predicated region
      $region17: #{tpu_custom_call.1} parent=5 // pred_check
        %p110 = pneg %p109
      $region18: #{tpu_custom_call.1} parent=5 // pred_check_branch
        %112 = sbr.rel (%p110) target = $region20
      $region19: #{tpu_custom_call.1} parent=5 // pred_region
        // Predicated region
        $region21: #{tpu_custom_call.1} parent=19 // pred_check
          %p113 = pneg %p33
        $region22: #{tpu_custom_call.1} parent=19 // pred_check_branch
          %115 = sbr.rel (%p113) target = $region24
        $region23: #{tpu_custom_call.1} parent=19 // pred_region
          %s116 = sand.u32 %s23, 1
          %s117 = scalar_lea.sflag [#allocation6], %s116
          %s118 = sand.u32 %s23, 1
          %s119 = smul.addr %s118, 8
          %s120 = scalar_lea.vmem [#allocation5], %s119
          %s122 = ssub.s32 128, 128
          %123 = vsyncadd %s117, %s122
          %s124 = smul.addr %s13, 128
          %s125 = scalar_lea.hbm %s0, %s124
          %s127 = sshll.u32 %s120, 4
          %s128 = int_to_ptr.vmem [resolvable:$true] %s127
          %130 = dma.hbm_to_vmem [thread:$0]  %s125, 128, %s128, %s117
        $region24: #{tpu_custom_call.1} parent=19 // pred_fallthru
          _
      $region20: #{tpu_custom_call.1} parent=5 // pred_fallthru
        _
      %p131 = scmp.le.s32.totalorder 1, %s13
      %p132 = scmp.lt.s32.totalorder %s13, 5
      %p133 = pnand %p131, %p132
      %p134 = pneg %p133
      // Predicated region
      $region25: #{tpu_custom_call.1} parent=5 // pred_check
        _
      $region26: #{tpu_custom_call.1} parent=5 // pred_check_branch
        %136 = sbr.rel (%p133) target = $region28
      $region27: #{tpu_custom_call.1} parent=5 // pred_region
        %s137 = ssub.s32 %s13, 1
        %s138 = sand.u32 %s26, 1
        %s139 = scalar_lea.sflag [#allocation6], %s138
        %s140 = sand.u32 %s26, 1
        %s141 = smul.addr %s140, 8
        %s142 = scalar_lea.vmem [#allocation5], %s141
        // Predicated region
        $region29: #{tpu_custom_call.1} parent=27 // pred_check
          %p143 = pneg %p39
        $region30: #{tpu_custom_call.1} parent=27 // pred_check_branch
          %145 = sbr.rel (%p143) target = $region32
        $region31: #{tpu_custom_call.1} parent=27 // pred_region
          %146 = dma.done %s139, 128
        $region32: #{tpu_custom_call.1} parent=27 // pred_fallthru
          _
        // Predicated region
        $region33: #{tpu_custom_call.1} parent=27 // pred_check
          %p147 = pneg %p60
        $region34: #{tpu_custom_call.1} parent=27 // pred_check_branch
          %149 = sbr.rel (%p147) target = $region36
        $region35: #{tpu_custom_call.1} parent=27 // pred_region
          %150 = dma.done [#allocation9], 512
        $region36: #{tpu_custom_call.1} parent=27 // pred_fallthru
          _
        %s151 = sand.u32 %s26, 1
        %s152 = scalar_lea.sflag [#allocation6], %s151
        %s153 = sand.u32 %s26, 1
        %s154 = smul.addr %s153, 8
        %s155 = scalar_lea.vmem [#allocation5], %s154
        %p156 = pneg %p39
        %p157 = pneg %p36
        %p158 = pneg %p60
        %p159 = pneg %p57
        %p160 = pneg %p81
        %p161 = pneg %p78
        %p162 = scmp.eq.s32.totalorder %s18, 0
        // Predicated region
        $region37: #{tpu_custom_call.1} parent=27 // pred_check
          %p163 = pneg %p162
        $region38: #{tpu_custom_call.1} parent=27 // pred_check_branch
          %165 = sbr.rel (%p163) target = $region40
        $region39: #{tpu_custom_call.1} parent=27 // pred_region
          %v166 = vld [vmem:[#allocation8] sm:$0xff]
          %v167 = vld [vmem:[#allocation8 + $0x8] sm:$0xff]
          %v168 = vld [vmem:[#allocation8 + $0x10] sm:$0xff]
          %v169 = vld [vmem:[#allocation8 + $0x18] sm:$0xff]
          %v170 = vmul.f32 %v166, %v166
          %v171 = vmul.f32 %v167, %v167
          %v172 = vmul.f32 %v168, %v168
          %v173 = vmul.f32 %v169, %v169
          %174 = vadd.xlane.f32.xlu0 %v170
          %v175 = vpop.xlane.xlu0 %174
          %176 = vadd.xlane.f32.xlu0 %v171
          %v177 = vpop.xlane.xlu0 %176
          %178 = vadd.xlane.f32.xlu0 %v172
          %v179 = vpop.xlane.xlu0 %178
          %180 = vadd.xlane.f32.xlu0 %v173
          %v181 = vpop.xlane.xlu0 %180
          %v182 = vmax.f32 %v175, 1e-24
          %v183 = vmax.f32 %v177, 1e-24
          %v184 = vmax.f32 %v179, 1e-24
          %v185 = vmax.f32 %v181, 1e-24
          %v186 = vrsqrt.pop %v182
          %v187 = vrsqrt.pop %v183
          %v188 = vrsqrt.pop %v184
          %v189 = vrsqrt.pop %v185
          %v190 = vmul.f32 %v166, %v186
          %v191 = vmul.f32 %v167, %v187
          %v192 = vmul.f32 %v168, %v188
          %v193 = vmul.f32 %v169, %v189
          %194 = vst [vmem:[#allocation2] sm:$0xff] %v190
          %195 = vst [vmem:[#allocation2 + $0x8] sm:$0xff] %v191
          %196 = vst [vmem:[#allocation2 + $0x10] sm:$0xff] %v192
          %197 = vst [vmem:[#allocation2 + $0x18] sm:$0xff] %v193
          %vm198 = vcmask 253952
          %199 = vst.msk [vmem:[#allocation3] sm:$0x1] %vm198, 0.0
          %s200 = scalar_lea.smem [#allocation4], 0
          %201 = sst [smem:[%s200]] 0.0
          %s202 = scalar_lea.smem [#allocation4], 1
          %203 = sst [smem:[%s202]] 0.0
          %s204 = scalar_lea.smem [#allocation4], 2
          %205 = sst [smem:[%s204]] 0.0
        $region40: #{tpu_custom_call.1} parent=27 // pred_fallthru
          _
        %v206 = vld [vmem:[%s142] sm:$0xff]
        %v207 = vmul.f32 %v206, %v206
        %208 = vadd.xlane.f32.xlu0 %v207
        %v209 = vpop.xlane.xlu0 %208
        %v210 = vmax.f32 %v209, 1e-24
        %v211 = vrsqrt.pop %v210
        %v212 = vmul.f32 %v211, 14.285714
        %v213 = vmul.f32 %v206, %v212
        %v214 = vld [vmem:[#allocation2] sm:$0xff]
        %v215 = vld [vmem:[#allocation2 + $0x8] sm:$0xff]
        %v216 = vld [vmem:[#allocation2 + $0x10] sm:$0xff]
        %v217 = vld [vmem:[#allocation2 + $0x18] sm:$0xff]
        %218 = vmatprep.subr.mxu0 0.0
        %219 = vmatpush1.xpose.msra.mxu0 0.0
        %220 = vmatprep.subr.mxu0 0.0
        %221 = vmatpush1.xpose.msra.mxu0 0.0
        %222 = vmatprep.subr.mxu0 0.0
        %223 = vmatpush1.xpose.msra.mxu0 0.0
        %224 = vmatprep.subr.mxu0 0.0
        %225 = vmatpush1.xpose.msra.mxu0 0.0
        %226 = vmatprep.subr.mxu0 0.0
        %227 = vmatpush1.xpose.msra.mxu0 0.0
        %228 = vmatprep.subr.mxu0 0.0
        %229 = vmatpush1.xpose.msra.mxu0 0.0
        %230 = vmatprep.subr.mxu0 0.0
        %231 = vmatpush1.xpose.msra.mxu0 0.0
        %232 = vmatprep.subr.mxu0 0.0
        %233 = vmatpush1.xpose.msra.mxu0 0.0
        %234 = vmatprep.subr.mxu0 0.0
        %235 = vmatpush1.xpose.msra.mxu0 0.0
        %236 = vmatprep.subr.mxu0 0.0
        %237 = vmatpush1.xpose.msra.mxu0 0.0
        %238 = vmatprep.subr.mxu0 0.0
        %239 = vmatpush1.xpose.msra.mxu0 0.0
        %240 = vmatprep.subr.mxu0 0.0
        %241 = vmatpush1.xpose.msra.mxu0 0.0
        %242 = vmatprep.subr.mxu0 0.0
        %243 = vmatpush1.xpose.msra.mxu0 %v217
        %244 = vmatprep.subr.mxu0 0.0
        %245 = vmatpush1.xpose.msra.mxu0 %v216
        %246 = vmatprep.subr.mxu0 0.0
        %247 = vmatpush1.xpose.msra.mxu0 %v215
        %248 = vmatprep.subr.mxu0 0.0
        %249 = vmatpush1.xpose.msra.mxu0 %v214
        %250 = vmatprep.subr.mxu0 0.0
        %251 = vmatpush2.xpose.msra.mxu0 0.0
        %252 = vmatprep.subr.mxu0 0.0
        %253 = vmatpush2.xpose.msra.mxu0 0.0
        %254 = vmatprep.subr.mxu0 0.0
        %255 = vmatpush2.xpose.msra.mxu0 0.0
        %256 = vmatprep.subr.mxu0 0.0
        %257 = vmatpush2.xpose.msra.mxu0 0.0
        %258 = vmatprep.subr.mxu0 0.0
        %259 = vmatpush2.xpose.msra.mxu0 0.0
        %260 = vmatprep.subr.mxu0 0.0
        %261 = vmatpush2.xpose.msra.mxu0 0.0
        %262 = vmatprep.subr.mxu0 0.0
        %263 = vmatpush2.xpose.msra.mxu0 0.0
        %264 = vmatprep.subr.mxu0 0.0
        %265 = vmatpush2.xpose.msra.mxu0 0.0
        %266 = vmatprep.subr.mxu0 0.0
        %267 = vmatpush2.xpose.msra.mxu0 0.0
        %268 = vmatprep.subr.mxu0 0.0
        %269 = vmatpush2.xpose.msra.mxu0 0.0
        %270 = vmatprep.subr.mxu0 0.0
        %271 = vmatpush2.xpose.msra.mxu0 0.0
        %272 = vmatprep.subr.mxu0 0.0
        %273 = vmatpush2.xpose.msra.mxu0 0.0
        %274 = vmatprep.subr.mxu0 0.0
        %275 = vmatpush2.xpose.msra.mxu0 0.0
        %276 = vmatprep.subr.mxu0 0.0
        %277 = vmatpush2.xpose.msra.mxu0 0.0
        %278 = vmatprep.subr.mxu0 0.0
        %279 = vmatpush2.xpose.msra.mxu0 0.0
        %280 = vmatprep.subr.mxu0 0.0
        %281 = vmatpush2.xpose.msra.mxu0 0.0
        %282 = vmatprep.mubr.f32.mxu0 0.0
        %283 = vmatmul.mubr.f32.gmra.mxu0 %v213
        %v284 = vpop.f32.mrf.mxu0
        %v285 = vadd.f32 0.0, %v284
        %v286 = vpop.f32.mrf.mxu0
        %287 = vdwg.mxu0
        %v288 = vmul.f32 %v285, 1.442695
        %v289 = vpow.pop %v288
        %vm290 = vcmask 261120
        %v291 = vsel %vm290, %v289, 0.0
        %292 = vadd.xlane.f32.xlu0 %v291
        %v293 = vpop.xlane.xlu0 %292
        %v294 = vld [vmem:[#allocation3] sm:$0x1]
        %v295 = vrot.slane %v291, 4
        %v296 = vadd.f32 %v291, %v295
        %v297 = vrot.slane %v296, 2
        %v298 = vadd.f32 %v296, %v297
        %v299 = vrot.slane %v298, 1
        %v300 = vadd.f32 %v298, %v299
        %v301 = vadd.f32 %v294, %v300
        %vm302 = vcmask 253952
        %303 = vst.msk [vmem:[#allocation3] sm:$0x1] %vm302, %v301
        %v304 = vlaneseq
        %v305 = vshrl.u32 %v304, 7
        %v306 = vlaneseq
        %v307 = vand.u32 %v306, 127
        %s308 = smul.u32 %s18, 8
        %v309 = vstv %s308
        %v310 = vadd.s32 %v305, %v309
        %vm311 = vcmp.eq.s32.totalorder %v307, %v310
        %s312 = sld [smem:[#allocation4]]
        %v313 = vsel %vm290, %v285, 0.0
        %314 = vadd.xlane.f32.xlu0 %v313
        %v315 = vpop.xlane.xlu0 %314
        %v316 = vrot.slane %v315, 4
        %v317 = vadd.f32 %v315, %v316
        %v318 = vrot.slane %v317, 2
        %v319 = vadd.f32 %v317, %v318
        %v320 = vrot.slane %v319, 1
        %v321 = vadd.f32 %v319, %v320
        %s322 = vtos %v321
        %s323 = sadd.f32 %s312, %s322
        %s324 = scalar_lea.smem [#allocation4], 0
        %325 = sst [smem:[%s324]] %s323
        %s326 = sld [smem:[#allocation4 + $0x1]]
        %v327 = vsel %vm311, %v285, 0.0
        %v328 = vsel %vm290, %v327, 0.0
        %329 = vadd.xlane.f32.xlu0 %v328
        %v330 = vpop.xlane.xlu0 %329
        %v331 = vrot.slane %v330, 4
        %v332 = vadd.f32 %v330, %v331
        %v333 = vrot.slane %v332, 2
        %v334 = vadd.f32 %v332, %v333
        %v335 = vrot.slane %v334, 1
        %v336 = vadd.f32 %v334, %v335
        %s337 = vtos %v336
        %s338 = sadd.f32 %s326, %s337
        %s339 = scalar_lea.smem [#allocation4], 1
        %340 = sst [smem:[%s339]] %s338
        %s341 = sld [smem:[#allocation4 + $0x2]]
        %v342 = vlog2.pop %v293
        %v343 = vmul.f32 %v342, 0.6931472
        %vm344 = vcmask 7168
        %v345 = vsel %vm344, %v343, 0.0
        %346 = vadd.xlane.f32.xlu0 %v345
        %v347 = vpop.xlane.xlu0 %346
        %v348 = vrot.slane %v347, 4
        %v349 = vadd.f32 %v347, %v348
        %v350 = vrot.slane %v349, 2
        %v351 = vadd.f32 %v349, %v350
        %v352 = vrot.slane %v351, 1
        %v353 = vadd.f32 %v351, %v352
        %s354 = vtos %v353
        %s355 = sadd.f32 %s341, %s354
        %s356 = scalar_lea.smem [#allocation4], 2
        %357 = sst [smem:[%s356]] %s355
        %p358 = scmp.eq.s32.totalorder %s18, 3
        // Predicated region
        $region41: #{tpu_custom_call.1} parent=27 // pred_check
          %p359 = pneg %p358
        $region42: #{tpu_custom_call.1} parent=27 // pred_check_branch
          %361 = sbr.rel (%p359) target = $region44
        $region43: #{tpu_custom_call.1} parent=27 // pred_region
          %v362 = vld [vmem:[#allocation3] sm:$0x1]
          %v363 = vlog2.pop %v362
          %v364 = vmul.f32 %v363, 0.6931472
          %v365 = vsel %vm302, %v364, 0.0
          %366 = vadd.xlane.f32.xlu0 %v365
          %v367 = vpop.xlane.xlu0 %366
          %v368 = vrot.slane %v367, 4
          %v369 = vadd.f32 %v367, %v368
          %v370 = vrot.slane %v369, 2
          %v371 = vadd.f32 %v369, %v370
          %v372 = vrot.slane %v371, 1
          %v373 = vadd.f32 %v371, %v372
          %s374 = vtos %v373
          %s375 = sld [smem:[#allocation4]]
          %s376 = smul.f32 %s375, 0.0032258064
          %s377 = sld [smem:[#allocation4 + $0x1]]
          %s378 = smul.f32 %s377, 0.8967742
          %s379 = sadd.f32 %s376, %s378
          %s380 = sld [smem:[#allocation4 + $0x2]]
          %s381 = ssub.f32 %s379, %s380
          %s382 = ssub.f32 0.0, %s381
          %v383 = vrcp.pop 32.0
          %s384 = vtos %v383
          %s385 = smul.f32 %s382, %s384
          %s386 = ssub.f32 %s379, %s374
          %s387 = ssub.f32 0.0, %s386
          %v388 = vrcp.pop 32.0
          %s389 = vtos %v388
          %s390 = smul.f32 %s387, %s389
          %s391 = sadd.f32 %s385, %s390
          %s392 = smul.f32 %s391, 0.5
          %s393 = scalar_lea.smem [#allocation10], 0
          %394 = sst [smem:[%s393]] %s392
        $region44: #{tpu_custom_call.1} parent=27 // pred_fallthru
          _
        // Predicated region
        $region45: #{tpu_custom_call.1} parent=27 // pred_check
          %p395 = pneg %p78
        $region46: #{tpu_custom_call.1} parent=27 // pred_check_branch
          %397 = sbr.rel (%p395) target = $region48
        $region47: #{tpu_custom_call.1} parent=27 // pred_region
          %s399 = ssub.s32 16, 16
          %400 = vsyncadd [#allocation7], %s399
          %403 = dma.smem_to_hbm [#allocation10], 16, %s2, [#allocation7]
        $region48: #{tpu_custom_call.1} parent=27 // pred_fallthru
          _
        // Predicated region
        $region49: #{tpu_custom_call.1} parent=27 // pred_check
          %p404 = pneg %p78
        $region50: #{tpu_custom_call.1} parent=27 // pred_check_branch
          %406 = sbr.rel (%p404) target = $region52
        $region51: #{tpu_custom_call.1} parent=27 // pred_region
          %407 = dma.done [#allocation7], 16
        $region52: #{tpu_custom_call.1} parent=27 // pred_fallthru
          _
        %408 = sfence
      $region28: #{tpu_custom_call.1} parent=5 // pred_fallthru
        _
      %p409 = scmp.le.s32.totalorder 2, %s13
      // Predicated region
      $region53: #{tpu_custom_call.1} parent=5 // pred_check
        %p410 = pneg %p409
      $region54: #{tpu_custom_call.1} parent=5 // pred_check_branch
        %412 = sbr.rel (%p410) target = $region56
      $region55: #{tpu_custom_call.1} parent=5 // pred_region
        %s413 = ssub.s32 %s13, 2
      $region56: #{tpu_custom_call.1} parent=5 // pred_fallthru
        _
    $region6: #{tpu_custom_call.1} parent=1 // loop_footer
      %s17 = sadd.s32 1, %s13
    $region7: #{tpu_custom_call.1} parent=1 // loop_footer_branch
      %12 = sbr.rel target = $region3
    $region8: #{tpu_custom_call.1} parent=1 // loop_exit
      _
    %414 = vsyncpa [#allocation6], 1
    %s415 = scalar_lea.sflag [#allocation6], 1
    %416 = vsyncpa %s415, 1
    %417 = vsyncpa [#allocation9], 1
    %418 = vsyncpa [#allocation7], 1
    %s419 = scalar_lea.sflag [#allocation7], 1
    %420 = vsyncpa %s419, 1

</llo_original>
